<compile_context>
chip_gen: v6e
topology: v6e:2x2x1
jax: 0.10.0
libtpu: 0.0.40
codegen_flags: <defaults>
</compile_context>

<pallas_src>
import math
import numpy as np
import jax
import jax.numpy as jnp
from jax import lax
from jax.experimental import pallas as pl
from jax.experimental.pallas import tpu as pltpu


def _round_up(x, m):
    return ((x + m - 1) // m) * m


def _compat_kernel(logits_ref, feat_ref, compat_ref,
                   w1_ref, b1_ref, gamma_ref, beta_ref, w2_ref, b2_ref,
                   out_ref):
    # ---- softmax folded into the compatibility matmul ----
    # bias = softmax(x) @ C == (exp(x - max) @ C) * (1 / sum(exp(x - max)))
    x = logits_ref[...].astype(jnp.float32)
    x_max = jnp.max(x, axis=-1, keepdims=True)
    ex = jnp.exp(x - x_max)
    bias_un = jnp.dot(ex, compat_ref[...].astype(jnp.float32),
                      preferred_element_type=jnp.float32)
    row_sum = jnp.sum(ex, axis=-1, keepdims=True)
    bias = bias_un * (1.0 / row_sum)      # exact divide (keeps 1e-4 tolerance)

    # ---- compatibility predictor MLP on shared features ----
    f = feat_ref[...].astype(jnp.float32)
    h = jnp.dot(f, w1_ref[...].astype(jnp.float32),
                preferred_element_type=jnp.float32) + b1_ref[...]
    # LayerNorm (eps = 1e-5, torch default), one-pass statistics
    mu = jnp.mean(h, axis=-1, keepdims=True)
    ms = jnp.mean(h * h, axis=-1, keepdims=True)
    var = ms - mu * mu
    hn = (h - mu) * lax.rsqrt(var + 1e-5)
    hn = hn * gamma_ref[...] + beta_ref[...]
    # exact (erf-based) GELU, matching torch.nn.GELU default
    g = 0.5 * hn * (1.0 + lax.erf(hn * (1.0 / math.sqrt(2.0))))
    # Dropout(0.1) is identity in eval mode
    add = jnp.dot(g, w2_ref[...].astype(jnp.float32),
                  preferred_element_type=jnp.float32) + b2_ref[...]

    out_ref[...] = (bias + add).astype(out_ref.dtype)


def character_diacritic_compatibility(base_logits, shared_features, params,
                                      *, tile_m=512):
    """base_logits: [B, S, Vb], shared_features: [B, S, D] -> [B, S, Vd]."""
    B, S, Vb = base_logits.shape
    D = shared_features.shape[-1]
    compat = params["compatibility_matrix"]          # [Vb, Vd]
    Vd = compat.shape[1]
    H = params["w1"].shape[1]                        # shared_dim // 2

    M = B * S

    # Effective row tile: large (amortizes ~0.35us per grid step), sublane
    # aligned, and keeps >= 2 grid steps when M allows it so both v7x
    # TensorCores get work under dimension_semantics=("parallel",).
    tm = max(8, min(tile_m, _round_up(M, 8)))
    if M > 8 and pl.cdiv(M, tm) < 2:
        tm = max(8, _round_up(pl.cdiv(M, 2), 8))
    Mp = _round_up(M, tm)                            # padded row count

    logits2d = base_logits.reshape(M, Vb)
    feat2d = shared_features.reshape(M, D)
    if Mp != M:
        pad = Mp - M
        logits2d = jnp.pad(logits2d, ((0, pad), (0, 0)))
        feat2d = jnp.pad(feat2d, ((0, pad), (0, 0)))

    # row-vector params (1, k) so they sit cleanly in VMEM tiles
    b1 = params["b1"].reshape(1, H)
    gamma = params["gamma"].reshape(1, H)
    beta = params["beta"].reshape(1, H)
    b2 = params["b2"].reshape(1, Vd)

    grid = (Mp // tm,)
    row_spec = lambda shape: pl.BlockSpec(shape, lambda i: (i, 0))
    full_spec = lambda shape: pl.BlockSpec(shape, lambda i: (0, 0))

    out2d = pl.pallas_call(
        _compat_kernel,
        out_shape=jax.ShapeDtypeStruct((Mp, Vd), base_logits.dtype),
        grid_spec=pl.GridSpec(
            grid=grid,
            in_specs=[
                row_spec((tm, Vb)),      # base_logits rows
                row_spec((tm, D)),       # shared_features rows
                full_spec((Vb, Vd)),     # compatibility matrix (VMEM-resident)
                full_spec((D, H)),       # w1
                full_spec((1, H)),       # b1
                full_spec((1, H)),       # gamma
                full_spec((1, H)),       # beta
                full_spec((H, Vd)),      # w2
                full_spec((1, Vd)),      # b2
            ],
            out_specs=row_spec((tm, Vd)),
        ),
        compiler_params=pltpu.CompilerParams(
            dimension_semantics=("parallel",)),
    )(logits2d, feat2d, compat,
      params["w1"], b1, gamma, beta, params["w2"], b2)

    return out2d[:M].reshape(B, S, Vd)


def _init_compatibility_matrix(base_vocab_size, diac_vocab_size):
    """Replicates the `else` branch of _initialize_compatibility (no vocab lists)."""
    cm = np.zeros((base_vocab_size, diac_vocab_size), dtype=np.float32)
    vowels = [2, 4, 8, 14, 15, 20, 21, 24, 26, 30, 34, 40, 41]
    tone_marks = [3, 4, 5, 6, 7]
    for v in vowels:
        for t in tone_marks:
            if v < base_vocab_size and t < diac_vocab_size:
                cm[v, t] = 2.0
    consonants = [i for i in range(base_vocab_size) if i not in vowels and i >= 2]
    for c in consonants:
        for t in tone_marks:
            if c < base_vocab_size and t < diac_vocab_size:
                cm[c, t] = -2.0
    if 1 < diac_vocab_size:
        cm[:, 1] = 1.0
    if 0 < base_vocab_size and 0 < diac_vocab_size:
        cm[0, 0] = 3.0
        cm[0, 1:] = -3.0
    return jnp.asarray(cm)


def _init_params(key, base_vocab, diac_vocab, shared_dim):
    H = shared_dim // 2
    k1, k2, k3, k4 = jax.random.split(key, 4)
    # deterministic synthetic init (kaiming-uniform-ish bounds like torch Linear)
    lim1 = 1.0 / math.sqrt(shared_dim)
    lim2 = 1.0 / math.sqrt(H)
    return {
        "compatibility_matrix": _init_compatibility_matrix(base_vocab, diac_vocab),
        "w1": jax.random.uniform(k1, (shared_dim, H), jnp.float32, -lim1, lim1),
        "b1": jax.random.uniform(k2, (H,), jnp.float32, -lim1, lim1),
        "gamma": jnp.ones((H,), jnp.float32),
        "beta": jnp.zeros((H,), jnp.float32),
        "w2": jax.random.uniform(k3, (H, diac_vocab), jnp.float32, -lim2, lim2),
        "b2": jax.random.uniform(k4, (diac_vocab,), jnp.float32, -lim2, lim2),
    }


def _reference(base_logits, shared_features, params):
    """Plain-JAX reference of the PyTorch forward (eval mode)."""
    p = jax.nn.softmax(base_logits.astype(jnp.float32), axis=-1)
    bias = p @ params["compatibility_matrix"]
    h = shared_features.astype(jnp.float32) @ params["w1"] + params["b1"]
    mu = h.mean(-1, keepdims=True)
    var = ((h - mu) ** 2).mean(-1, keepdims=True)
    hn = (h - mu) / jnp.sqrt(var + 1e-5) * params["gamma"] + params["beta"]
    g = 0.5 * hn * (1.0 + lax.erf(hn / math.sqrt(2.0)))
    add = g @ params["w2"] + params["b2"]
    return bias + add


if __name__ == "__main__":
    BASE_VOCAB, DIAC_VOCAB, SHARED_DIM = 48, 24, 32
    key = jax.random.PRNGKey(0)
    kp, kx, kf = jax.random.split(key, 3)
    params = _init_params(kp, BASE_VOCAB, DIAC_VOCAB, SHARED_DIM)

    # small canonical test shape
    B, S = 2, 8
    base_logits = jax.random.normal(kx, (B, S, BASE_VOCAB), jnp.float32)
    shared_features = jax.random.normal(kf, (B, S, SHARED_DIM), jnp.float32)

    out = character_diacritic_compatibility(base_logits, shared_features, params)
    out = jax.block_until_ready(out)
    ref = _reference(base_logits, shared_features, params)
    assert out.shape == (B, S, DIAC_VOCAB)
    err = float(jnp.max(jnp.abs(out - ref)))
    assert err < 1e-4, f"mismatch vs reference: {err}"

    # second shape exercising the ragged-row padding path (M not tile-aligned)
    B2, S2 = 4, 37
    bl2 = jax.random.normal(kx, (B2, S2, BASE_VOCAB), jnp.float32)
    sf2 = jax.random.normal(kf, (B2, S2, SHARED_DIM), jnp.float32)
    out2 = jax.block_until_ready(
        character_diacritic_compatibility(bl2, sf2, params))
    ref2 = _reference(bl2, sf2, params)
    err2 = float(jnp.max(jnp.abs(out2 - ref2)))
    assert out2.shape == (B2, S2, DIAC_VOCAB)
    assert err2 < 1e-4, f"mismatch vs reference (padded path): {err2}"

    print("KERNEL_OK")
</pallas_src>

<mosaic_0001>
module attributes {stable_mosaic.version = 11 : i64} {
  func.func @_compat_kernel(%arg0: i32, %arg1: memref<8x48xf32, #tpu.memory_space<vmem>>, %arg2: memref<8x32xf32, #tpu.memory_space<vmem>>, %arg3: memref<48x24xf32, #tpu.memory_space<vmem>>, %arg4: memref<32x16xf32, #tpu.memory_space<vmem>>, %arg5: memref<1x16xf32, #tpu.memory_space<vmem>>, %arg6: memref<1x16xf32, #tpu.memory_space<vmem>>, %arg7: memref<1x16xf32, #tpu.memory_space<vmem>>, %arg8: memref<16x24xf32, #tpu.memory_space<vmem>>, %arg9: memref<1x24xf32, #tpu.memory_space<vmem>>, %arg10: memref<8x24xf32, #tpu.memory_space<vmem>>) attributes {dimension_semantics = [#tpu.dimension_semantics<parallel>], iteration_bounds = array<i64: 2>, scalar_prefetch = 0 : i64, scratch_operands = 0 : i64, tpu.core_type = #tpu.core_type<tc>, window_params = [{transform_indices = @transform_0, window_bounds = array<i64: 8, 48>}, {transform_indices = @transform_1, window_bounds = array<i64: 8, 32>}, {pipeline_mode = #tpu.pipeline_mode<synchronous>, transform_indices = @transform_2, window_bounds = array<i64: 48, 24>}, {pipeline_mode = #tpu.pipeline_mode<synchronous>, transform_indices = @transform_3, window_bounds = array<i64: 32, 16>}, {pipeline_mode = #tpu.pipeline_mode<synchronous>, transform_indices = @transform_4, window_bounds = array<i64: 1, 16>}, {pipeline_mode = #tpu.pipeline_mode<synchronous>, transform_indices = @transform_5, window_bounds = array<i64: 1, 16>}, {pipeline_mode = #tpu.pipeline_mode<synchronous>, transform_indices = @transform_6, window_bounds = array<i64: 1, 16>}, {pipeline_mode = #tpu.pipeline_mode<synchronous>, transform_indices = @transform_7, window_bounds = array<i64: 16, 24>}, {pipeline_mode = #tpu.pipeline_mode<synchronous>, transform_indices = @transform_8, window_bounds = array<i64: 1, 24>}, {transform_indices = @transform_9, window_bounds = array<i64: 8, 24>}]} {
    %c0 = arith.constant 0 : index
    %c0_0 = arith.constant 0 : index
    %0 = vector.load %arg1[%c0, %c0_0] : memref<8x48xf32, #tpu.memory_space<vmem>>, vector<8x48xf32>
    %cst = arith.constant dense<0xFF800000> : vector<8xf32>
    %1 = vector.multi_reduction <maximumf>, %0, %cst [1] : vector<8x48xf32> to vector<8xf32>
    %2 = vector.shape_cast %1 : vector<8xf32> to vector<8x1xf32>
    %3 = vector.broadcast %2 : vector<8x1xf32> to vector<8x48xf32>
    %4 = arith.subf %0, %3 : vector<8x48xf32>
    %5 = math.exp %4 : vector<8x48xf32>
    %c0_1 = arith.constant 0 : index
    %c0_2 = arith.constant 0 : index
    %6 = vector.load %arg3[%c0_1, %c0_2] : memref<48x24xf32, #tpu.memory_space<vmem>>, vector<48x24xf32>
    %cst_3 = arith.constant dense<0.000000e+00> : vector<8x24xf32>
    %7 = tpu.matmul %5, %6, %cst_3 {dimension_numbers = #tpu.dot_dimension_numbers<[1], [0], [0], [1], [0, 0, 1, 1], [], []>} : vector<8x48xf32>, vector<48x24xf32>, vector<8x24xf32> -> vector<8x24xf32>
    %cst_4 = arith.constant dense<0.000000e+00> : vector<8xf32>
    %8 = vector.multi_reduction <add>, %5, %cst_4 [1] : vector<8x48xf32> to vector<8xf32>
    %9 = vector.shape_cast %8 : vector<8xf32> to vector<8x1xf32>
    %cst_5 = arith.constant 1.000000e+00 : f32
    %10 = vector.broadcast %cst_5 : f32 to vector<8x1xf32>
    %11 = arith.divf %10, %9 : vector<8x1xf32>
    %12 = vector.broadcast %11 : vector<8x1xf32> to vector<8x24xf32>
    %13 = arith.mulf %7, %12 : vector<8x24xf32>
    %c0_6 = arith.constant 0 : index
    %c0_7 = arith.constant 0 : index
    %14 = vector.load %arg2[%c0_6, %c0_7] : memref<8x32xf32, #tpu.memory_space<vmem>>, vector<8x32xf32>
    %c0_8 = arith.constant 0 : index
    %c0_9 = arith.constant 0 : index
    %15 = vector.load %arg4[%c0_8, %c0_9] : memref<32x16xf32, #tpu.memory_space<vmem>>, vector<32x16xf32>
    %cst_10 = arith.constant dense<0.000000e+00> : vector<8x16xf32>
    %16 = tpu.matmul %14, %15, %cst_10 {dimension_numbers = #tpu.dot_dimension_numbers<[1], [0], [0], [1], [0, 0, 1, 1], [], []>} : vector<8x32xf32>, vector<32x16xf32>, vector<8x16xf32> -> vector<8x16xf32>
    %c0_11 = arith.constant 0 : index
    %c0_12 = arith.constant 0 : index
    %17 = vector.load %arg5[%c0_11, %c0_12] : memref<1x16xf32, #tpu.memory_space<vmem>>, vector<1x16xf32>
    %18 = vector.broadcast %17 : vector<1x16xf32> to vector<8x16xf32>
    %19 = arith.addf %16, %18 : vector<8x16xf32>
    %cst_13 = arith.constant dense<0.000000e+00> : vector<8xf32>
    %20 = vector.multi_reduction <add>, %19, %cst_13 [1] : vector<8x16xf32> to vector<8xf32>
    %21 = vector.shape_cast %20 : vector<8xf32> to vector<8x1xf32>
    %cst_14 = arith.constant 1.600000e+01 : f32
    %22 = vector.broadcast %cst_14 : f32 to vector<8x1xf32>
    %23 = arith.divf %21, %22 : vector<8x1xf32>
    %24 = arith.mulf %19, %19 : vector<8x16xf32>
    %cst_15 = arith.constant dense<0.000000e+00> : vector<8xf32>
    %25 = vector.multi_reduction <add>, %24, %cst_15 [1] : vector<8x16xf32> to vector<8xf32>
    %26 = vector.shape_cast %25 : vector<8xf32> to vector<8x1xf32>
    %cst_16 = arith.constant 1.600000e+01 : f32
    %27 = vector.broadcast %cst_16 : f32 to vector<8x1xf32>
    %28 = arith.divf %26, %27 : vector<8x1xf32>
    %29 = arith.mulf %23, %23 : vector<8x1xf32>
    %30 = arith.subf %28, %29 : vector<8x1xf32>
    %31 = vector.broadcast %23 : vector<8x1xf32> to vector<8x16xf32>
    %32 = arith.subf %19, %31 : vector<8x16xf32>
    %cst_17 = arith.constant 9.99999974E-6 : f32
    %33 = vector.broadcast %cst_17 : f32 to vector<8x1xf32>
    %34 = arith.addf %30, %33 : vector<8x1xf32>
    %35 = math.rsqrt %34 : vector<8x1xf32>
    %36 = vector.broadcast %35 : vector<8x1xf32> to vector<8x16xf32>
    %37 = arith.mulf %32, %36 : vector<8x16xf32>
    %c0_18 = arith.constant 0 : index
    %c0_19 = arith.constant 0 : index
    %38 = vector.load %arg6[%c0_18, %c0_19] : memref<1x16xf32, #tpu.memory_space<vmem>>, vector<1x16xf32>
    %39 = vector.broadcast %38 : vector<1x16xf32> to vector<8x16xf32>
    %40 = arith.mulf %37, %39 : vector<8x16xf32>
    %c0_20 = arith.constant 0 : index
    %c0_21 = arith.constant 0 : index
    %41 = vector.load %arg7[%c0_20, %c0_21] : memref<1x16xf32, #tpu.memory_space<vmem>>, vector<1x16xf32>
    %42 = vector.broadcast %41 : vector<1x16xf32> to vector<8x16xf32>
    %43 = arith.addf %40, %42 : vector<8x16xf32>
    %cst_22 = arith.constant 5.000000e-01 : f32
    %44 = vector.broadcast %cst_22 : f32 to vector<8x16xf32>
    %45 = arith.mulf %44, %43 : vector<8x16xf32>
    %cst_23 = arith.constant 0.707106769 : f32
    %46 = vector.broadcast %cst_23 : f32 to vector<8x16xf32>
    %47 = arith.mulf %43, %46 : vector<8x16xf32>
    %48 = math.erf %47 : vector<8x16xf32>
    %cst_24 = arith.constant 1.000000e+00 : f32
    %49 = vector.broadcast %cst_24 : f32 to vector<8x16xf32>
    %50 = arith.addf %49, %48 : vector<8x16xf32>
    %51 = arith.mulf %45, %50 : vector<8x16xf32>
    %c0_25 = arith.constant 0 : index
    %c0_26 = arith.constant 0 : index
    %52 = vector.load %arg8[%c0_25, %c0_26] : memref<16x24xf32, #tpu.memory_space<vmem>>, vector<16x24xf32>
    %cst_27 = arith.constant dense<0.000000e+00> : vector<8x24xf32>
    %53 = tpu.matmul %51, %52, %cst_27 {dimension_numbers = #tpu.dot_dimension_numbers<[1], [0], [0], [1], [0, 0, 1, 1], [], []>} : vector<8x16xf32>, vector<16x24xf32>, vector<8x24xf32> -> vector<8x24xf32>
    %c0_28 = arith.constant 0 : index
    %c0_29 = arith.constant 0 : index
    %54 = vector.load %arg9[%c0_28, %c0_29] : memref<1x24xf32, #tpu.memory_space<vmem>>, vector<1x24xf32>
    %55 = vector.broadcast %54 : vector<1x24xf32> to vector<8x24xf32>
    %56 = arith.addf %53, %55 : vector<8x24xf32>
    %57 = arith.addf %13, %56 : vector<8x24xf32>
    %c0_30 = arith.constant 0 : index
    %c0_31 = arith.constant 0 : index
    %58 = vector.load %arg10[%c0_30, %c0_31] : memref<8x24xf32, #tpu.memory_space<vmem>>, vector<8x24xf32>
    tpu.vector_store %arg10[%c0_30, %c0_31], %57 {strides = array<i32>} : memref<8x24xf32, #tpu.memory_space<vmem>>, vector<8x24xf32>,
    return
  }
  func.func @transform_0(%arg0: i32) -> (i32, i32) {
    %c0_i32 = arith.constant 0 : i32
    %c0_i32_0 = arith.constant 0 : i32
    return %arg0, %c0_i32 : i32, i32
  }
  func.func @transform_1(%arg0: i32) -> (i32, i32) {
    %c0_i32 = arith.constant 0 : i32
    %c0_i32_0 = arith.constant 0 : i32
    return %arg0, %c0_i32 : i32, i32
  }
  func.func @transform_2(%arg0: i32) -> (i32, i32) {
    %c0_i32 = arith.constant 0 : i32
    %c0_i32_0 = arith.constant 0 : i32
    %c0_i32_1 = arith.constant 0 : i32
    return %c0_i32, %c0_i32_0 : i32, i32
  }
  func.func @transform_3(%arg0: i32) -> (i32, i32) {
    %c0_i32 = arith.constant 0 : i32
    %c0_i32_0 = arith.constant 0 : i32
    %c0_i32_1 = arith.constant 0 : i32
    return %c0_i32, %c0_i32_0 : i32, i32
  }
  func.func @transform_4(%arg0: i32) -> (i32, i32) {
    %c0_i32 = arith.constant 0 : i32
    %c0_i32_0 = arith.constant 0 : i32
    %c0_i32_1 = arith.constant 0 : i32
    return %c0_i32, %c0_i32_0 : i32, i32
  }
  func.func @transform_5(%arg0: i32) -> (i32, i32) {
    %c0_i32 = arith.constant 0 : i32
    %c0_i32_0 = arith.constant 0 : i32
    %c0_i32_1 = arith.constant 0 : i32
    return %c0_i32, %c0_i32_0 : i32, i32
  }
  func.func @transform_6(%arg0: i32) -> (i32, i32) {
    %c0_i32 = arith.constant 0 : i32
    %c0_i32_0 = arith.constant 0 : i32
    %c0_i32_1 = arith.constant 0 : i32
    return %c0_i32, %c0_i32_0 : i32, i32
  }
  func.func @transform_7(%arg0: i32) -> (i32, i32) {
    %c0_i32 = arith.constant 0 : i32
    %c0_i32_0 = arith.constant 0 : i32
    %c0_i32_1 = arith.constant 0 : i32
    return %c0_i32, %c0_i32_0 : i32, i32
  }
  func.func @transform_8(%arg0: i32) -> (i32, i32) {
    %c0_i32 = arith.constant 0 : i32
    %c0_i32_0 = arith.constant 0 : i32
    %c0_i32_1 = arith.constant 0 : i32
    return %c0_i32, %c0_i32_0 : i32, i32
  }
  func.func @transform_9(%arg0: i32) -> (i32, i32) {
    %c0_i32 = arith.constant 0 : i32
    %c0_i32_0 = arith.constant 0 : i32
    return %arg0, %c0_i32 : i32, i32
  }
}

</mosaic_0001>

<llo_original>
// kernel: tpu_custom_call.1
$region0: #{tpu_custom_call.1}
  #allocation0 [shape = 'u32[]', space=smem, size = 0x4, offset = 0x4, fixed_abs, tag = 'smem constant byte address 0x4 - core index']
  #allocation1 [shape = 'u32[144,128]{1,0:T(1,128)}', space=vmem, size = 0x12000, scoped, tag = 'internal scratch']
  %s0 = inlined_call_operand.vmem [shape: f32[16,48], index: 0, kind: input, shape index: {}]
  %s1 = inlined_call_operand.vmem [shape: f32[16,32], index: 1, kind: input, shape index: {}]
  %s2 = inlined_call_operand.vmem [shape: f32[48,24], index: 2, kind: input, shape index: {}]
  %s3 = inlined_call_operand.vmem [shape: f32[32,16], index: 3, kind: input, shape index: {}]
  %s4 = inlined_call_operand.vmem [shape: f32[1,16], index: 4, kind: input, shape index: {}]
  %s5 = inlined_call_operand.vmem [shape: f32[1,16], index: 5, kind: input, shape index: {}]
  %s6 = inlined_call_operand.vmem [shape: f32[1,16], index: 6, kind: input, shape index: {}]
  %s7 = inlined_call_operand.vmem [shape: f32[16,24], index: 7, kind: input, shape index: {}]
  %s8 = inlined_call_operand.vmem [shape: f32[1,24], index: 8, kind: input, shape index: {}]
  %s9 = inlined_call_operand.hbm [shape: f32[16,24], index: 9, kind: output, shape index: {}]
  %s10 = sld [smem:[#allocation0]]
  $region69: #{tpu_custom_call.1} parent=0
    _
  %s12 = ssub.s32 1, %s10
  %s13 = scalar_select 0, %s12, %s10
  $region1: #{tpu_custom_call.1} parent=0
    #allocation2 [shape = 'u8[8192]{0}', space=vmem, size = 0x2000, scoped, tag = 'output window, operand 0']
    #allocation3 [shape = 's32[2]{0}', space=sflag, size = 0x8, scoped, tag = 'scoped memory for tpu_custom_call.1']
    %14 = vsyncpa [#allocation3], 0
    %s15 = scalar_lea.sflag [#allocation3], 1
    %16 = vsyncpa %s15, 0
    loop: start=0, step=1, limit=4
    $region2: #{tpu_custom_call.1} parent=1 // loop_pre_header
      _
    $region3: #{tpu_custom_call.1} parent=1 // loop_header
      %s18 = sphi 0, %s22
      %p19 = scmp.ge.s32.totalorder %s18, 4
      %s28 = sphi 0, %s30
      %s31 = sphi 0, %s28
      %s32 = sphi 0, %s31
      %s48 = sphi 0, %s32
      %s54 = sphi 0, %s56
      %s57 = sphi 0, %s54
      %s58 = sphi 0, %s57
      %s74 = sphi 0, %s58
      %s78 = sphi 0, %s78
      %s80 = sphi 0, %s78
      %s81 = sphi 0, %s80
      %s95 = sphi 0, %s81
      %s99 = sphi 0, %s99
      %s101 = sphi 0, %s99
      %s102 = sphi 0, %s101
      %s116 = sphi 0, %s102
      %s120 = sphi 0, %s120
      %s122 = sphi 0, %s120
      %s123 = sphi 0, %s122
      %s137 = sphi 0, %s123
      %s141 = sphi 0, %s141
      %s143 = sphi 0, %s141
      %s144 = sphi 0, %s143
      %s158 = sphi 0, %s144
      %s162 = sphi 0, %s162
      %s164 = sphi 0, %s162
      %s165 = sphi 0, %s164
      %s179 = sphi 0, %s165
      %s183 = sphi 0, %s183
      %s185 = sphi 0, %s183
      %s186 = sphi 0, %s185
      %s200 = sphi 0, %s186
      %s204 = sphi 0, %s204
      %s206 = sphi 0, %s204
      %s207 = sphi 0, %s206
      %s221 = sphi 0, %s207
      %s227 = sphi 0, %s229
      %s230 = sphi 0, %s227
      %s231 = sphi 0, %s230
      %s247 = sphi 0, %s231
    $region4: #{tpu_custom_call.1} parent=1 // loop_header_branch
      %21 = sbr.rel (%p19) target = $region8
    $region5: #{tpu_custom_call.1} parent=1 // loop_body
      %s23 = ssub.s32 %s18, 1
      %s24 = ssub.s32 %s18, 2
      %s25 = sadd.s32 %s18, 1
      %s26 = ssub.s32 %s18, %s25
      %p27 = scmp.eq.s32.totalorder %s26, 0
      %s29 = sadd.s32 %s28, 1
      %s30 = scalar_select %p27, %s28, %s29
      %p33 = pneg %p27
      %p34 = scmp.eq.s32.totalorder %s18, 1
      %p35 = por %p33, %p34
      %p36 = scmp.ne.s32.totalorder %s28, %s31
      %p37 = scmp.eq.s32.totalorder %s18, 0
      %p38 = por %p36, %p37
      %p39 = scmp.ne.s32.totalorder %s28, %s31
      %p40 = scmp.eq.s32.totalorder %s23, 1
      %p41 = por %p39, %p40
      %p42 = scmp.ne.s32.totalorder %s31, %s32
      %p43 = scmp.eq.s32.totalorder %s23, 0
      %p44 = por %p42, %p43
      %p45 = scmp.ne.s32.totalorder %s31, %s32
      %p46 = scmp.eq.s32.totalorder %s24, 1
      %p47 = por %p45, %p46
      %p49 = scmp.ne.s32.totalorder %s32, %s48
      %p50 = scmp.eq.s32.totalorder %s24, 0
      %p51 = por %p49, %p50
      %s52 = ssub.s32 %s18, %s25
      %p53 = scmp.eq.s32.totalorder %s52, 0
      %s55 = sadd.s32 %s54, 1
      %s56 = scalar_select %p53, %s54, %s55
      %p59 = pneg %p53
      %p60 = scmp.eq.s32.totalorder %s18, 1
      %p61 = por %p59, %p60
      %p62 = scmp.ne.s32.totalorder %s54, %s57
      %p63 = scmp.eq.s32.totalorder %s18, 0
      %p64 = por %p62, %p63
      %p65 = scmp.ne.s32.totalorder %s54, %s57
      %p66 = scmp.eq.s32.totalorder %s23, 1
      %p67 = por %p65, %p66
      %p68 = scmp.ne.s32.totalorder %s57, %s58
      %p69 = scmp.eq.s32.totalorder %s23, 0
      %p70 = por %p68, %p69
      %p71 = scmp.ne.s32.totalorder %s57, %s58
      %p72 = scmp.eq.s32.totalorder %s24, 1
      %p73 = por %p71, %p72
      %p75 = scmp.ne.s32.totalorder %s58, %s74
      %p76 = scmp.eq.s32.totalorder %s24, 0
      %p77 = por %p75, %p76
      %s79 = sadd.s32 %s78, 1
      %p82 = scmp.eq.s32.totalorder %s18, 1
      %p83 = scmp.ne.s32.totalorder %s78, %s80
      %p84 = scmp.eq.s32.totalorder %s18, 0
      %p85 = por %p83, %p84
      %p86 = scmp.ne.s32.totalorder %s78, %s80
      %p87 = scmp.eq.s32.totalorder %s23, 1
      %p88 = por %p86, %p87
      %p89 = scmp.ne.s32.totalorder %s80, %s81
      %p90 = scmp.eq.s32.totalorder %s23, 0
      %p91 = por %p89, %p90
      %p92 = scmp.ne.s32.totalorder %s80, %s81
      %p93 = scmp.eq.s32.totalorder %s24, 1
      %p94 = por %p92, %p93
      %p96 = scmp.ne.s32.totalorder %s81, %s95
      %p97 = scmp.eq.s32.totalorder %s24, 0
      %p98 = por %p96, %p97
      %s100 = sadd.s32 %s99, 1
      %p103 = scmp.eq.s32.totalorder %s18, 1
      %p104 = scmp.ne.s32.totalorder %s99, %s101
      %p105 = scmp.eq.s32.totalorder %s18, 0
      %p106 = por %p104, %p105
      %p107 = scmp.ne.s32.totalorder %s99, %s101
      %p108 = scmp.eq.s32.totalorder %s23, 1
      %p109 = por %p107, %p108
      %p110 = scmp.ne.s32.totalorder %s101, %s102
      %p111 = scmp.eq.s32.totalorder %s23, 0
      %p112 = por %p110, %p111
      %p113 = scmp.ne.s32.totalorder %s101, %s102
      %p114 = scmp.eq.s32.totalorder %s24, 1
      %p115 = por %p113, %p114
      %p117 = scmp.ne.s32.totalorder %s102, %s116
      %p118 = scmp.eq.s32.totalorder %s24, 0
      %p119 = por %p117, %p118
      %s121 = sadd.s32 %s120, 1
      %p124 = scmp.eq.s32.totalorder %s18, 1
      %p125 = scmp.ne.s32.totalorder %s120, %s122
      %p126 = scmp.eq.s32.totalorder %s18, 0
      %p127 = por %p125, %p126
      %p128 = scmp.ne.s32.totalorder %s120, %s122
      %p129 = scmp.eq.s32.totalorder %s23, 1
      %p130 = por %p128, %p129
      %p131 = scmp.ne.s32.totalorder %s122, %s123
      %p132 = scmp.eq.s32.totalorder %s23, 0
      %p133 = por %p131, %p132
      %p134 = scmp.ne.s32.totalorder %s122, %s123
      %p135 = scmp.eq.s32.totalorder %s24, 1
      %p136 = por %p134, %p135
      %p138 = scmp.ne.s32.totalorder %s123, %s137
      %p139 = scmp.eq.s32.totalorder %s24, 0
      %p140 = por %p138, %p139
      %s142 = sadd.s32 %s141, 1
      %p145 = scmp.eq.s32.totalorder %s18, 1
      %p146 = scmp.ne.s32.totalorder %s141, %s143
      %p147 = scmp.eq.s32.totalorder %s18, 0
      %p148 = por %p146, %p147
      %p149 = scmp.ne.s32.totalorder %s141, %s143
      %p150 = scmp.eq.s32.totalorder %s23, 1
      %p151 = por %p149, %p150
      %p152 = scmp.ne.s32.totalorder %s143, %s144
      %p153 = scmp.eq.s32.totalorder %s23, 0
      %p154 = por %p152, %p153
      %p155 = scmp.ne.s32.totalorder %s143, %s144
      %p156 = scmp.eq.s32.totalorder %s24, 1
      %p157 = por %p155, %p156
      %p159 = scmp.ne.s32.totalorder %s144, %s158
      %p160 = scmp.eq.s32.totalorder %s24, 0
      %p161 = por %p159, %p160
      %s163 = sadd.s32 %s162, 1
      %p166 = scmp.eq.s32.totalorder %s18, 1
      %p167 = scmp.ne.s32.totalorder %s162, %s164
      %p168 = scmp.eq.s32.totalorder %s18, 0
      %p169 = por %p167, %p168
      %p170 = scmp.ne.s32.totalorder %s162, %s164
      %p171 = scmp.eq.s32.totalorder %s23, 1
      %p172 = por %p170, %p171
      %p173 = scmp.ne.s32.totalorder %s164, %s165
      %p174 = scmp.eq.s32.totalorder %s23, 0
      %p175 = por %p173, %p174
      %p176 = scmp.ne.s32.totalorder %s164, %s165
      %p177 = scmp.eq.s32.totalorder %s24, 1
      %p178 = por %p176, %p177
      %p180 = scmp.ne.s32.totalorder %s165, %s179
      %p181 = scmp.eq.s32.totalorder %s24, 0
      %p182 = por %p180, %p181
      %s184 = sadd.s32 %s183, 1
      %p187 = scmp.eq.s32.totalorder %s18, 1
      %p188 = scmp.ne.s32.totalorder %s183, %s185
      %p189 = scmp.eq.s32.totalorder %s18, 0
      %p190 = por %p188, %p189
      %p191 = scmp.ne.s32.totalorder %s183, %s185
      %p192 = scmp.eq.s32.totalorder %s23, 1
      %p193 = por %p191, %p192
      %p194 = scmp.ne.s32.totalorder %s185, %s186
      %p195 = scmp.eq.s32.totalorder %s23, 0
      %p196 = por %p194, %p195
      %p197 = scmp.ne.s32.totalorder %s185, %s186
      %p198 = scmp.eq.s32.totalorder %s24, 1
      %p199 = por %p197, %p198
      %p201 = scmp.ne.s32.totalorder %s186, %s200
      %p202 = scmp.eq.s32.totalorder %s24, 0
      %p203 = por %p201, %p202
      %s205 = sadd.s32 %s204, 1
      %p208 = scmp.eq.s32.totalorder %s18, 1
      %p209 = scmp.ne.s32.totalorder %s204, %s206
      %p210 = scmp.eq.s32.totalorder %s18, 0
      %p211 = por %p209, %p210
      %p212 = scmp.ne.s32.totalorder %s204, %s206
      %p213 = scmp.eq.s32.totalorder %s23, 1
      %p214 = por %p212, %p213
      %p215 = scmp.ne.s32.totalorder %s206, %s207
      %p216 = scmp.eq.s32.totalorder %s23, 0
      %p217 = por %p215, %p216
      %p218 = scmp.ne.s32.totalorder %s206, %s207
      %p219 = scmp.eq.s32.totalorder %s24, 1
      %p220 = por %p218, %p219
      %p222 = scmp.ne.s32.totalorder %s207, %s221
      %p223 = scmp.eq.s32.totalorder %s24, 0
      %p224 = por %p222, %p223
      %s225 = ssub.s32 %s18, %s25
      %p226 = scmp.eq.s32.totalorder %s225, 0
      %s228 = sadd.s32 %s227, 1
      %s229 = scalar_select %p226, %s227, %s228
      %p232 = pneg %p226
      %p233 = scmp.eq.s32.totalorder %s18, 1
      %p234 = por %p232, %p233
      %p235 = scmp.ne.s32.totalorder %s227, %s230
      %p236 = scmp.eq.s32.totalorder %s18, 0
      %p237 = por %p235, %p236
      %p238 = scmp.ne.s32.totalorder %s227, %s230
      %p239 = scmp.eq.s32.totalorder %s23, 1
      %p240 = por %p238, %p239
      %p241 = scmp.ne.s32.totalorder %s230, %s231
      %p242 = scmp.eq.s32.totalorder %s23, 0
      %p243 = por %p241, %p242
      %p244 = scmp.ne.s32.totalorder %s230, %s231
      %p245 = scmp.eq.s32.totalorder %s24, 1
      %p246 = por %p244, %p245
      %p248 = scmp.ne.s32.totalorder %s231, %s247
      %p249 = scmp.eq.s32.totalorder %s24, 0
      %p250 = por %p248, %p249
      %p251 = scmp.le.s32.totalorder 1, %s18
      %p252 = scmp.lt.s32.totalorder %s18, 3
      %p253 = pnand %p251, %p252
      %p254 = pneg %p253
      // Predicated region
      $region9: #{tpu_custom_call.1} parent=5 // pred_check
        _
      $region10: #{tpu_custom_call.1} parent=5 // pred_check_branch
        %256 = sbr.rel (%p253) target = $region12
      $region11: #{tpu_custom_call.1} parent=5 // pred_region
        %s257 = ssub.s32 %s18, 1
        // Predicated region
        $region13: #{tpu_custom_call.1} parent=11 // pred_check
          %p258 = pneg %p91
        $region14: #{tpu_custom_call.1} parent=11 // pred_check_branch
          %260 = sbr.rel (%p258) target = $region16
        $region15: #{tpu_custom_call.1} parent=11 // pred_region
          _
        $region16: #{tpu_custom_call.1} parent=11 // pred_fallthru
          _
        // Predicated region
        $region17: #{tpu_custom_call.1} parent=11 // pred_check
          %p261 = pneg %p112
        $region18: #{tpu_custom_call.1} parent=11 // pred_check_branch
          %263 = sbr.rel (%p261) target = $region20
        $region19: #{tpu_custom_call.1} parent=11 // pred_region
          _
        $region20: #{tpu_custom_call.1} parent=11 // pred_fallthru
          _
        // Predicated region
        $region21: #{tpu_custom_call.1} parent=11 // pred_check
          %p264 = pneg %p133
        $region22: #{tpu_custom_call.1} parent=11 // pred_check_branch
          %266 = sbr.rel (%p264) target = $region24
        $region23: #{tpu_custom_call.1} parent=11 // pred_region
          _
        $region24: #{tpu_custom_call.1} parent=11 // pred_fallthru
          _
        // Predicated region
        $region25: #{tpu_custom_call.1} parent=11 // pred_check
          %p267 = pneg %p154
        $region26: #{tpu_custom_call.1} parent=11 // pred_check_branch
          %269 = sbr.rel (%p267) target = $region28
        $region27: #{tpu_custom_call.1} parent=11 // pred_region
          _
        $region28: #{tpu_custom_call.1} parent=11 // pred_fallthru
          _
        // Predicated region
        $region29: #{tpu_custom_call.1} parent=11 // pred_check
          %p270 = pneg %p175
        $region30: #{tpu_custom_call.1} parent=11 // pred_check_branch
          %272 = sbr.rel (%p270) target = $region32
        $region31: #{tpu_custom_call.1} parent=11 // pred_region
          _
        $region32: #{tpu_custom_call.1} parent=11 // pred_fallthru
          _
        // Predicated region
        $region33: #{tpu_custom_call.1} parent=11 // pred_check
          %p273 = pneg %p196
        $region34: #{tpu_custom_call.1} parent=11 // pred_check_branch
          %275 = sbr.rel (%p273) target = $region36
        $region35: #{tpu_custom_call.1} parent=11 // pred_region
          _
        $region36: #{tpu_custom_call.1} parent=11 // pred_fallthru
          _
        // Predicated region
        $region37: #{tpu_custom_call.1} parent=11 // pred_check
          %p276 = pneg %p217
        $region38: #{tpu_custom_call.1} parent=11 // pred_check_branch
          %278 = sbr.rel (%p276) target = $region40
        $region39: #{tpu_custom_call.1} parent=11 // pred_region
          _
        $region40: #{tpu_custom_call.1} parent=11 // pred_fallthru
          _
      $region12: #{tpu_custom_call.1} parent=5 // pred_fallthru
        _
      %p279 = scmp.lt.s32.totalorder %s18, 2
      // Predicated region
      $region41: #{tpu_custom_call.1} parent=5 // pred_check
        %p280 = pneg %p279
      $region42: #{tpu_custom_call.1} parent=5 // pred_check_branch
        %282 = sbr.rel (%p280) target = $region44
      $region43: #{tpu_custom_call.1} parent=5 // pred_region
        // Predicated region
        $region45: #{tpu_custom_call.1} parent=43 // pred_check
          %p283 = pneg %p38
        $region46: #{tpu_custom_call.1} parent=43 // pred_check_branch
          %285 = sbr.rel (%p283) target = $region48
        $region47: #{tpu_custom_call.1} parent=43 // pred_region
          %p286 = scmp.lt.s32.totalorder %s18, 1
          %s287 = scalar_select %p286, %s18, 1
          %s288 = smul.addr %s287, 8
          %s289 = scalar_lea.vmem %s0, %s288
        $region48: #{tpu_custom_call.1} parent=43 // pred_fallthru
          _
        // Predicated region
        $region49: #{tpu_custom_call.1} parent=43 // pred_check
          %p290 = pneg %p64
        $region50: #{tpu_custom_call.1} parent=43 // pred_check_branch
          %292 = sbr.rel (%p290) target = $region52
        $region51: #{tpu_custom_call.1} parent=43 // pred_region
          %p293 = scmp.lt.s32.totalorder %s18, 1
          %s294 = scalar_select %p293, %s18, 1
          %s295 = smul.addr %s294, 8
          %s296 = scalar_lea.vmem %s1, %s295
        $region52: #{tpu_custom_call.1} parent=43 // pred_fallthru
          _
      $region44: #{tpu_custom_call.1} parent=5 // pred_fallthru
        _
      %p297 = scmp.le.s32.totalorder 1, %s18
      %p298 = scmp.lt.s32.totalorder %s18, 3
      %p299 = pnand %p297, %p298
      %p300 = pneg %p299
      // Predicated region
      $region53: #{tpu_custom_call.1} parent=5 // pred_check
        _
      $region54: #{tpu_custom_call.1} parent=5 // pred_check_branch
        %302 = sbr.rel (%p299) target = $region56
      $region55: #{tpu_custom_call.1} parent=5 // pred_region
        %s303 = ssub.s32 %s18, 1
        %p304 = scmp.lt.s32.totalorder %s23, 1
        %s305 = scalar_select %p304, %s23, 1
        %s306 = smul.addr %s305, 8
        %s307 = scalar_lea.vmem %s0, %s306
        %p308 = pneg %p44
        %p309 = pneg %p41
        %p310 = scmp.lt.s32.totalorder %s23, 1
        %s311 = scalar_select %p310, %s23, 1
        %s312 = smul.addr %s311, 8
        %s313 = scalar_lea.vmem %s1, %s312
        %p314 = pneg %p70
        %p315 = pneg %p67
        %p316 = pneg %p91
        %p317 = pneg %p88
        %p318 = pneg %p112
        %p319 = pneg %p109
        %p320 = pneg %p133
        %p321 = pneg %p130
        %p322 = pneg %p154
        %p323 = pneg %p151
        %p324 = pneg %p175
        %p325 = pneg %p172
        %p326 = pneg %p196
        %p327 = pneg %p193
        %p328 = pneg %p217
        %p329 = pneg %p214
        %p330 = pneg %p243
        %p331 = pneg %p240
        %s332 = sand.u32 %s230, 1
        %s333 = scalar_lea.sflag [#allocation3], %s332
        %s334 = sand.u32 %s230, 1
        %s335 = smul.addr %s334, 8
        %s336 = scalar_lea.vmem [#allocation2], %s335
        %p337 = scmp.lt.s32.totalorder %s23, 1
        %s338 = scalar_select %p337, %s23, 1
        %s339 = smul.addr %s338, 8
        %s340 = scalar_lea.vmem %s0, %s339
        %p341 = scmp.lt.s32.totalorder %s23, 1
        %s342 = scalar_select %p341, %s23, 1
        %s343 = smul.addr %s342, 8
        %s344 = scalar_lea.vmem %s1, %s343
        %v345 = vld [vmem:[%s340] sm:$0xff]
        %vm346 = vcmask 392192
        %v347 = vsel %vm346, %v345, -inf
        %348 = vmax.xlane.f32.xlu0 %v347
        %v349 = vpop.xlane.xlu0 %348
        %v350 = vsub.f32 %v345, %v349
        %v351 = vmul.f32 %v350, 1.442695
        %v352 = vpow.pop %v351
        %v353 = vld [vmem:[%s2] sm:$0xff]
        %v354 = vld [vmem:[%s2 + $0x8] sm:$0xff]
        %v355 = vld [vmem:[%s2 + $0x10] sm:$0xff]
        %v356 = vld [vmem:[%s2 + $0x18] sm:$0xff]
        %v357 = vld [vmem:[%s2 + $0x20] sm:$0xff]
        %v358 = vld [vmem:[%s2 + $0x28] sm:$0xff]
        %v360 = vsel %vm346, %v352, 0
        %362 = vmatprep.subr.mxu0 0.0
        %363 = vmatpush1.msra.mxu0 0.0
        %364 = vmatprep.subr.mxu0 0.0
        %365 = vmatpush1.msra.mxu0 0.0
        %366 = vmatprep.subr.mxu0 0.0
        %367 = vmatpush1.msra.mxu0 0.0
        %368 = vmatprep.subr.mxu0 0.0
        %369 = vmatpush1.msra.mxu0 0.0
        %370 = vmatprep.subr.mxu0 0.0
        %371 = vmatpush1.msra.mxu0 0.0
        %372 = vmatprep.subr.mxu0 0.0
        %373 = vmatpush1.msra.mxu0 0.0
        %374 = vmatprep.subr.mxu0 0.0
        %375 = vmatpush1.msra.mxu0 0.0
        %376 = vmatprep.subr.mxu0 0.0
        %377 = vmatpush1.msra.mxu0 0.0
        %378 = vmatprep.subr.mxu0 0.0
        %379 = vmatpush1.msra.mxu0 0.0
        %380 = vmatprep.subr.mxu0 0.0
        %381 = vmatpush1.msra.mxu0 0.0
        %382 = vmatprep.subr.mxu0 0.0
        %383 = vmatpush1.msra.mxu0 %v358
        %384 = vmatprep.subr.mxu0 0.0
        %385 = vmatpush1.msra.mxu0 %v357
        %386 = vmatprep.subr.mxu0 0.0
        %387 = vmatpush1.msra.mxu0 %v356
        %388 = vmatprep.subr.mxu0 0.0
        %389 = vmatpush1.msra.mxu0 %v355
        %390 = vmatprep.subr.mxu0 0.0
        %391 = vmatpush1.msra.mxu0 %v354
        %392 = vmatprep.subr.mxu0 0.0
        %393 = vmatpush1.msra.mxu0 %v353
        %394 = vmatprep.subr.mxu0 0.0
        %395 = vmatpush2.msra.mxu0 0.0
        %396 = vmatprep.subr.mxu0 0.0
        %397 = vmatpush2.msra.mxu0 0.0
        %398 = vmatprep.subr.mxu0 0.0
        %399 = vmatpush2.msra.mxu0 0.0
        %400 = vmatprep.subr.mxu0 0.0
        %401 = vmatpush2.msra.mxu0 0.0
        %402 = vmatprep.subr.mxu0 0.0
        %403 = vmatpush2.msra.mxu0 0.0
        %404 = vmatprep.subr.mxu0 0.0
        %405 = vmatpush2.msra.mxu0 0.0
        %406 = vmatprep.subr.mxu0 0.0
        %407 = vmatpush2.msra.mxu0 0.0
        %408 = vmatprep.subr.mxu0 0.0
        %409 = vmatpush2.msra.mxu0 0.0
        %410 = vmatprep.subr.mxu0 0.0
        %411 = vmatpush2.msra.mxu0 0.0
        %412 = vmatprep.subr.mxu0 0.0
        %413 = vmatpush2.msra.mxu0 0.0
        %414 = vmatprep.subr.mxu0 0.0
        %415 = vmatpush2.msra.mxu0 0.0
        %416 = vmatprep.subr.mxu0 0.0
        %417 = vmatpush2.msra.mxu0 0.0
        %418 = vmatprep.subr.mxu0 0.0
        %419 = vmatpush2.msra.mxu0 0.0
        %420 = vmatprep.subr.mxu0 0.0
        %421 = vmatpush2.msra.mxu0 0.0
        %422 = vmatprep.subr.mxu0 0.0
        %423 = vmatpush2.msra.mxu0 0.0
        %424 = vmatprep.subr.mxu0 0.0
        %425 = vmatpush2.msra.mxu0 0.0
        %426 = vmatprep.mubr.f32.mxu0 0.0
        %427 = vmatmul.mubr.f32.gmra.mxu0 %v360
        %v428 = vpop.f32.mrf.mxu0
        %v429 = vadd.f32 0.0, %v428
        %v430 = vpop.f32.mrf.mxu0
        %431 = vdwg.mxu0
        %v432 = vsel %vm346, %v352, 0.0
        %433 = vadd.xlane.f32.xlu0 %v432
        %v434 = vpop.xlane.xlu0 %433
        %v435 = vrcp.pop %v434
        %v436 = vmul.f32 1.0, %v435
        %v437 = vmul.f32 %v429, %v436
        %v438 = vld [vmem:[%s344] sm:$0xff]
        %v439 = vld [vmem:[%s3] sm:$0xff]
        %v440 = vld [vmem:[%s3 + $0x8] sm:$0xff]
        %v441 = vld [vmem:[%s3 + $0x10] sm:$0xff]
        %v442 = vld [vmem:[%s3 + $0x18] sm:$0xff]
        %v443 = vld [vmem:[%s4] sm:$0x1]
        %v445 = vlaneseq
        %v446 = vshrl.u32 %v445, 7
        %v447 = vsub.s32 0, %v446
        %v448 = vrot.slane %v443, %v447
        %vm450 = vcmask 261120
        %v452 = vsel %vm450, %v438, 0
        %454 = vmatprep.subr.mxu0 0.0
        %455 = vmatpush1.msra.mxu0 0.0
        %456 = vmatprep.subr.mxu0 0.0
        %457 = vmatpush1.msra.mxu0 0.0
        %458 = vmatprep.subr.mxu0 0.0
        %459 = vmatpush1.msra.mxu0 0.0
        %460 = vmatprep.subr.mxu0 0.0
        %461 = vmatpush1.msra.mxu0 0.0
        %462 = vmatprep.subr.mxu0 0.0
        %463 = vmatpush1.msra.mxu0 0.0
        %464 = vmatprep.subr.mxu0 0.0
        %465 = vmatpush1.msra.mxu0 0.0
        %466 = vmatprep.subr.mxu0 0.0
        %467 = vmatpush1.msra.mxu0 0.0
        %468 = vmatprep.subr.mxu0 0.0
        %469 = vmatpush1.msra.mxu0 0.0
        %470 = vmatprep.subr.mxu0 0.0
        %471 = vmatpush1.msra.mxu0 0.0
        %472 = vmatprep.subr.mxu0 0.0
        %473 = vmatpush1.msra.mxu0 0.0
        %474 = vmatprep.subr.mxu0 0.0
        %475 = vmatpush1.msra.mxu0 0.0
        %476 = vmatprep.subr.mxu0 0.0
        %477 = vmatpush1.msra.mxu0 0.0
        %478 = vmatprep.subr.mxu0 0.0
        %479 = vmatpush1.msra.mxu0 %v442
        %480 = vmatprep.subr.mxu0 0.0
        %481 = vmatpush1.msra.mxu0 %v441
        %482 = vmatprep.subr.mxu0 0.0
        %483 = vmatpush1.msra.mxu0 %v440
        %484 = vmatprep.subr.mxu0 0.0
        %485 = vmatpush1.msra.mxu0 %v439
        %486 = vmatprep.subr.mxu0 0.0
        %487 = vmatpush2.msra.mxu0 0.0
        %488 = vmatprep.subr.mxu0 0.0
        %489 = vmatpush2.msra.mxu0 0.0
        %490 = vmatprep.subr.mxu0 0.0
        %491 = vmatpush2.msra.mxu0 0.0
        %492 = vmatprep.subr.mxu0 0.0
        %493 = vmatpush2.msra.mxu0 0.0
        %494 = vmatprep.subr.mxu0 0.0
        %495 = vmatpush2.msra.mxu0 0.0
        %496 = vmatprep.subr.mxu0 0.0
        %497 = vmatpush2.msra.mxu0 0.0
        %498 = vmatprep.subr.mxu0 0.0
        %499 = vmatpush2.msra.mxu0 0.0
        %500 = vmatprep.subr.mxu0 0.0
        %501 = vmatpush2.msra.mxu0 0.0
        %502 = vmatprep.subr.mxu0 0.0
        %503 = vmatpush2.msra.mxu0 0.0
        %504 = vmatprep.subr.mxu0 0.0
        %505 = vmatpush2.msra.mxu0 0.0
        %506 = vmatprep.subr.mxu0 0.0
        %507 = vmatpush2.msra.mxu0 0.0
        %508 = vmatprep.subr.mxu0 0.0
        %509 = vmatpush2.msra.mxu0 0.0
        %510 = vmatprep.subr.mxu0 0.0
        %511 = vmatpush2.msra.mxu0 0.0
        %512 = vmatprep.subr.mxu0 0.0
        %513 = vmatpush2.msra.mxu0 0.0
        %514 = vmatprep.subr.mxu0 0.0
        %515 = vmatpush2.msra.mxu0 0.0
        %516 = vmatprep.subr.mxu0 0.0
        %517 = vmatpush2.msra.mxu0 0.0
        %518 = vmatprep.mubr.f32.mxu0 0.0
        %519 = vmatmul.mubr.f32.gmra.mxu0 %v452
        %v520 = vpop.f32.mrf.mxu0
        %v521 = vadd.f32 %v448, %v520
        %v522 = vpop.f32.mrf.mxu0
        %523 = vdwg.mxu0
        %vm524 = vcmask 130048
        %v525 = vsel %vm524, %v521, 0.0
        %526 = vadd.xlane.f32.xlu0 %v525
        %v527 = vpop.xlane.xlu0 %526
        %v528 = vrcp.pop 16.0
        %v529 = vmul.f32 %v527, %v528
        %v530 = vmul.f32 %v521, %v521
        %v531 = vsel %vm524, %v530, 0.0
        %532 = vadd.xlane.f32.xlu0 %v531
        %v533 = vpop.xlane.xlu0 %532
        %v534 = vmul.f32 %v533, %v528
        %v535 = vmul.f32 %v529, %v529
        %v536 = vsub.f32 %v534, %v535
        %v537 = vsub.f32 %v521, %v529
        %v538 = vadd.f32 %v536, 1e-05
        %v539 = vrsqrt.pop %v538
        %v540 = vmul.f32 %v537, %v539
        %v541 = vld [vmem:[%s5] sm:$0x1]
        %v543 = vlaneseq
        %v544 = vshrl.u32 %v543, 7
        %v545 = vsub.s32 0, %v544
        %v546 = vrot.slane %v541, %v545
        %v548 = vmul.f32 %v540, %v546
        %v549 = vld [vmem:[%s6] sm:$0x1]
        %v551 = vlaneseq
        %v552 = vshrl.u32 %v551, 7
        %v553 = vsub.s32 0, %v552
        %v554 = vrot.slane %v549, %v553
        %v556 = vadd.f32 %v548, %v554
        %v557 = vmul.f32 %v556, 0.5
        %v558 = vmul.f32 %v556, 0.70710677
        %v559 = verf.f32.pop %v558
        %v560 = vadd.f32 %v559, 1.0
        %v561 = vmul.f32 %v557, %v560
        %v562 = vld [vmem:[%s7] sm:$0xff]
        %v563 = vld [vmem:[%s7 + $0x8] sm:$0xff]
        %v564 = vld [vmem:[%s8] sm:$0x1]
        %v566 = vlaneseq
        %v567 = vshrl.u32 %v566, 7
        %v568 = vsub.s32 0, %v567
        %v569 = vrot.slane %v564, %v568
        %v572 = vsel %vm524, %v561, 0
        %574 = vmatprep.subr.mxu0 0.0
        %575 = vmatpush1.msra.mxu0 0.0
        %576 = vmatprep.subr.mxu0 0.0
        %577 = vmatpush1.msra.mxu0 0.0
        %578 = vmatprep.subr.mxu0 0.0
        %579 = vmatpush1.msra.mxu0 0.0
        %580 = vmatprep.subr.mxu0 0.0
        %581 = vmatpush1.msra.mxu0 0.0
        %582 = vmatprep.subr.mxu0 0.0
        %583 = vmatpush1.msra.mxu0 0.0
        %584 = vmatprep.subr.mxu0 0.0
        %585 = vmatpush1.msra.mxu0 0.0
        %586 = vmatprep.subr.mxu0 0.0
        %587 = vmatpush1.msra.mxu0 0.0
        %588 = vmatprep.subr.mxu0 0.0
        %589 = vmatpush1.msra.mxu0 0.0
        %590 = vmatprep.subr.mxu0 0.0
        %591 = vmatpush1.msra.mxu0 0.0
        %592 = vmatprep.subr.mxu0 0.0
        %593 = vmatpush1.msra.mxu0 0.0
        %594 = vmatprep.subr.mxu0 0.0
        %595 = vmatpush1.msra.mxu0 0.0
        %596 = vmatprep.subr.mxu0 0.0
        %597 = vmatpush1.msra.mxu0 0.0
        %598 = vmatprep.subr.mxu0 0.0
        %599 = vmatpush1.msra.mxu0 0.0
        %600 = vmatprep.subr.mxu0 0.0
        %601 = vmatpush1.msra.mxu0 0.0
        %602 = vmatprep.subr.mxu0 0.0
        %603 = vmatpush1.msra.mxu0 %v563
        %604 = vmatprep.subr.mxu0 0.0
        %605 = vmatpush1.msra.mxu0 %v562
        %606 = vmatprep.subr.mxu0 0.0
        %607 = vmatpush2.msra.mxu0 0.0
        %608 = vmatprep.subr.mxu0 0.0
        %609 = vmatpush2.msra.mxu0 0.0
        %610 = vmatprep.subr.mxu0 0.0
        %611 = vmatpush2.msra.mxu0 0.0
        %612 = vmatprep.subr.mxu0 0.0
        %613 = vmatpush2.msra.mxu0 0.0
        %614 = vmatprep.subr.mxu0 0.0
        %615 = vmatpush2.msra.mxu0 0.0
        %616 = vmatprep.subr.mxu0 0.0
        %617 = vmatpush2.msra.mxu0 0.0
        %618 = vmatprep.subr.mxu0 0.0
        %619 = vmatpush2.msra.mxu0 0.0
        %620 = vmatprep.subr.mxu0 0.0
        %621 = vmatpush2.msra.mxu0 0.0
        %622 = vmatprep.subr.mxu0 0.0
        %623 = vmatpush2.msra.mxu0 0.0
        %624 = vmatprep.subr.mxu0 0.0
        %625 = vmatpush2.msra.mxu0 0.0
        %626 = vmatprep.subr.mxu0 0.0
        %627 = vmatpush2.msra.mxu0 0.0
        %628 = vmatprep.subr.mxu0 0.0
        %629 = vmatpush2.msra.mxu0 0.0
        %630 = vmatprep.subr.mxu0 0.0
        %631 = vmatpush2.msra.mxu0 0.0
        %632 = vmatprep.subr.mxu0 0.0
        %633 = vmatpush2.msra.mxu0 0.0
        %634 = vmatprep.subr.mxu0 0.0
        %635 = vmatpush2.msra.mxu0 0.0
        %636 = vmatprep.subr.mxu0 0.0
        %637 = vmatpush2.msra.mxu0 0.0
        %638 = vmatprep.mubr.f32.mxu0 0.0
        %639 = vmatmul.mubr.f32.gmra.mxu0 %v572
        %v640 = vpop.f32.mrf.mxu0
        %v641 = vadd.f32 %v569, %v640
        %v642 = vpop.f32.mrf.mxu0
        %643 = vdwg.mxu0
        %v644 = vadd.f32 %v437, %v641
        %vm645 = vcmask 195584
        %646 = vst.msk [vmem:[%s336] sm:$0xff] %vm645, %v644
        %s647 = sand.u32 %s230, 1
        %s648 = scalar_lea.sflag [#allocation3], %s647
        %s649 = sand.u32 %s230, 1
        %s650 = smul.addr %s649, 8
        %s651 = scalar_lea.vmem [#allocation2], %s650
        // Predicated region
        $region57: #{tpu_custom_call.1} parent=55 // pred_check
          %p652 = pneg %p240
        $region58: #{tpu_custom_call.1} parent=55 // pred_check_branch
          %654 = sbr.rel (%p652) target = $region60
        $region59: #{tpu_custom_call.1} parent=55 // pred_region
          %s656 = ssub.s32 128, 128
          %657 = vsyncadd %s648, %s656
          %s658 = smul.addr %s23, 128
          %s659 = scalar_lea.hbm %s9, %s658
          %s661 = sshll.u32 %s651, 4
          %s662 = int_to_ptr.vmem [resolvable:$true] %s661
          %664 = dma.vmem_to_hbm [thread:$0]  %s662, 128, %s659, %s648
        $region60: #{tpu_custom_call.1} parent=55 // pred_fallthru
          _
      $region56: #{tpu_custom_call.1} parent=5 // pred_fallthru
        _
      %p665 = scmp.le.s32.totalorder 2, %s18
      // Predicated region
      $region61: #{tpu_custom_call.1} parent=5 // pred_check
        %p666 = pneg %p665
      $region62: #{tpu_custom_call.1} parent=5 // pred_check_branch
        %668 = sbr.rel (%p666) target = $region64
      $region63: #{tpu_custom_call.1} parent=5 // pred_region
        %s669 = ssub.s32 %s18, 2
        // Predicated region
        $region65: #{tpu_custom_call.1} parent=63 // pred_check
          %p670 = pneg %p246
        $region66: #{tpu_custom_call.1} parent=63 // pred_check_branch
          %672 = sbr.rel (%p670) target = $region68
        $region67: #{tpu_custom_call.1} parent=63 // pred_region
          %s673 = sand.u32 %s231, 1
          %s674 = scalar_lea.sflag [#allocation3], %s673
          %s675 = sand.u32 %s231, 1
          %s676 = smul.addr %s675, 8
          %s677 = scalar_lea.vmem [#allocation2], %s676
          %678 = dma.done %s674, 128
        $region68: #{tpu_custom_call.1} parent=63 // pred_fallthru
          _
      $region64: #{tpu_custom_call.1} parent=5 // pred_fallthru
        _
    $region6: #{tpu_custom_call.1} parent=1 // loop_footer
      %s22 = sadd.s32 1, %s18
    $region7: #{tpu_custom_call.1} parent=1 // loop_footer_branch
      %17 = sbr.rel target = $region3
    $region8: #{tpu_custom_call.1} parent=1 // loop_exit
      _
    %679 = vsyncpa [#allocation3], 1
    %s680 = scalar_lea.sflag [#allocation3], 1
    %681 = vsyncpa %s680, 1

</llo_original>
